<compile_context>
chip_gen: v7x
topology: tpu7x:2x2x1
jax: 0.10.0
libtpu: 0.0.40
codegen_flags: <defaults>
</compile_context>

<pallas_src>
import jax
import jax.numpy as jnp
from jax.experimental import pallas as pl
from jax.experimental.pallas import tpu as pltpu
from jax.scipy.special import digamma, gammaln


# ----------------------------------------------------------------------------
# Pallas kernel: all views fused into one block-diagonal MLP
# ----------------------------------------------------------------------------
def _fused_classifier_kernel(x_ref, w1_ref, b1_ref, w23_ref, b23_ref, ev_ref):
    x = x_ref[...]                                                # (B, V*F)

    # fc[0]: block-diag Linear(V*F, V*F) + ReLU  (all views in one MXU pass)
    h = jnp.dot(x, w1_ref[...], preferred_element_type=jnp.float32) + b1_ref[...]
    h = jnp.maximum(h, 0.0)

    # fused fc[2] + fcclass: block-diag Linear(V*F, V*2)
    logits = (jnp.dot(h, w23_ref[...], preferred_element_type=jnp.float32)
              + b23_ref[...])

    # fcevd: Softplus (beta=1), numerically stable form
    ev = jnp.maximum(logits, 0.0) + jnp.log1p(jnp.exp(-jnp.abs(logits)))
    ev_ref[...] = ev.astype(ev_ref.dtype)


def _block_diag(blocks):
    """blocks: (V, r, c) -> (V*r, V*c) block-diagonal matrix."""
    V, r, c = blocks.shape
    out = jnp.zeros((V * r, V * c), blocks.dtype)
    for v in range(V):
        out = out.at[v * r:(v + 1) * r, v * c:(v + 1) * c].set(blocks[v])
    return out


def infer_evidence(X_list, params):
    """All `views` classifiers in a single, grid-free pallas_call.

    X_list: list of (B, F) float32 arrays, one per view.
    returns evidence (views, B, 2) float32.
    """
    views = len(X_list)
    B, F = X_list[0].shape
    w1, b1, w2, b2, w3, b3 = params                    # stored (in, out)

    # ---- wrapper-side algebraic fusion & block-diagonal packing ------------
    # Fuse fc[2] and fcclass (no nonlinearity between them).
    W23 = jnp.einsum('vfh,vhc->vfc', w2, w3)           # (V, F, 2)
    b23 = jnp.einsum('voh,vhc->voc', b2, w3) + b3      # (V, 1, 2)

    X_packed = jnp.concatenate(X_list, axis=1)         # (B, V*F)
    W1_bd = _block_diag(w1)                            # (V*F, V*F)
    b1_packed = jnp.reshape(b1, (1, views * F))        # (1, V*F)
    W23_bd = _block_diag(W23)                          # (V*F, V*2)
    b23_packed = jnp.reshape(b23, (1, views * 2))      # (1, V*2)

    ev_packed = pl.pallas_call(
        _fused_classifier_kernel,
        out_shape=jax.ShapeDtypeStruct((B, views * 2), jnp.float32),
        in_specs=[pl.BlockSpec(memory_space=pltpu.MemorySpace.VMEM)] * 5,
        out_specs=pl.BlockSpec(memory_space=pltpu.MemorySpace.VMEM),
    )(X_packed, W1_bd, b1_packed, W23_bd, b23_packed)

    # (B, V*2) -> (V, B, 2)
    evidence = jnp.transpose(ev_packed.reshape(B, views, 2), (1, 0, 2))
    return evidence


# ----------------------------------------------------------------------------
# Evidential loss (plain JAX glue — digamma/lgamma have no Mosaic lowering)
# ----------------------------------------------------------------------------
# TODO(synk): ce_loss / KL use digamma & lgamma which are not lowerable in
# Mosaic, so this (B, 2)-sized epilogue stays outside the Pallas kernel.
def _kl(alpha, c):
    beta = jnp.ones((1, c), dtype=alpha.dtype)
    s_alpha = jnp.sum(alpha, axis=1, keepdims=True)
    s_beta = jnp.sum(beta, axis=1, keepdims=True)
    lnB = gammaln(s_alpha) - jnp.sum(gammaln(alpha), axis=1, keepdims=True)
    lnB_uni = jnp.sum(gammaln(beta), axis=1, keepdims=True) - gammaln(s_beta)
    dg0 = digamma(s_alpha)
    dg1 = digamma(alpha)
    kl = (jnp.sum((alpha - beta) * (dg1 - dg0), axis=1, keepdims=True)
          + lnB + lnB_uni)
    return kl


def _ce_loss(p, alpha, c, global_step, annealing_step):
    S = jnp.sum(alpha, axis=1, keepdims=True)
    E = alpha - 1.0
    label = jax.nn.one_hot(p, num_classes=c, dtype=alpha.dtype)
    A = jnp.sum(label * (digamma(S) - digamma(alpha)), axis=1, keepdims=True)
    annealing_coef = min(1.0, float(global_step) / float(annealing_step))
    alp = E * (1.0 - label) + 1.0
    B = annealing_coef * _kl(alp, c)
    return A + B


# ----------------------------------------------------------------------------
# fushion_decision forward
# ----------------------------------------------------------------------------
def fushion_decision_forward(params, X_list, y, global_step, lambda_epochs=50):
    views = len(X_list)
    X_list = [x.astype(jnp.float32) for x in X_list]
    evidence = infer_evidence(X_list, params)                # Pallas kernel

    loss = 0.0
    u_cols = []
    for v in range(views):
        alpha_v = evidence[v] + 1.0
        loss = loss + _ce_loss(y, alpha_v, 2, global_step, lambda_epochs)
        # DSuncertain: S = sum(alpha); u = views / S   (matches PyTorch source)
        S_v = jnp.sum(alpha_v, axis=1, keepdims=True)        # (B, 1)
        u_cols.append(float(views) / S_v)
    loss = jnp.mean(loss)

    # torch.cat([u[0], u[1], u[2]], dim=1)  ->  (B, views)
    uncertaincof = jnp.concatenate(u_cols, axis=1)
    evidence_list = [evidence[v] for v in range(views)]
    return evidence_list, uncertaincof, loss


# ----------------------------------------------------------------------------
# Pure-JAX reference for the classifier path (correctness check only)
# ----------------------------------------------------------------------------
def _reference_evidence(X_list, params):
    w1, b1, w2, b2, w3, b3 = params
    evs = []
    for v in range(len(X_list)):
        h = jnp.maximum(X_list[v] @ w1[v] + b1[v], 0.0)
        h = h @ w2[v] + b2[v]
        logits = h @ w3[v] + b3[v]
        evs.append(jax.nn.softplus(logits))
    return jnp.stack(evs, axis=0)


# ----------------------------------------------------------------------------
# Deterministic parameter init (shapes from Classifier.__init__)
# ----------------------------------------------------------------------------
def init_params(key, views, feature_out):
    F = feature_out
    H = F // 2
    ks = jax.random.split(key, 6)
    w1 = 0.1 * jax.random.normal(ks[0], (views, F, F), jnp.float32)
    b1 = 0.1 * jax.random.normal(ks[1], (views, 1, F), jnp.float32)
    w2 = 0.1 * jax.random.normal(ks[2], (views, F, H), jnp.float32)
    b2 = 0.1 * jax.random.normal(ks[3], (views, 1, H), jnp.float32)
    w3 = 0.1 * jax.random.normal(ks[4], (views, H, 2), jnp.float32)
    b3 = 0.1 * jax.random.normal(ks[5], (views, 1, 2), jnp.float32)
    return (w1, b1, w2, b2, w3, b3)


if __name__ == "__main__":
    views = 3
    feature_out = 32
    batch = 8
    lambda_epochs = 50
    global_step = 10

    key = jax.random.PRNGKey(0)
    k_param, k_x, k_y = jax.random.split(key, 3)

    params = init_params(k_param, views, feature_out)
    X_list = [
        jax.random.normal(jax.random.fold_in(k_x, v), (batch, feature_out),
                          jnp.float32)
        for v in range(views)
    ]
    y = jax.random.randint(k_y, (batch,), 0, 2, jnp.int32)

    evidence, uncertaincof, loss = fushion_decision_forward(
        params, X_list, y, global_step, lambda_epochs)

    jax.block_until_ready(evidence)
    jax.block_until_ready(uncertaincof)
    jax.block_until_ready(loss)

    assert len(evidence) == views
    assert evidence[0].shape == (batch, 2)
    assert uncertaincof.shape == (batch, views)
    assert loss.shape == ()

    # correctness check vs pure-JAX reference of the classifier path
    ev_ref = _reference_evidence(X_list, params)
    ev_ker = jnp.stack(evidence, axis=0)
    assert bool(jnp.allclose(ev_ker, ev_ref, rtol=1e-4, atol=1e-4)), \
        "Pallas evidence mismatch vs reference"

    print("KERNEL_OK")
</pallas_src>

<mosaic_0001>
module attributes {stable_mosaic.version = 11 : i64} {
  func.func @_fused_classifier_kernel(%arg0: memref<8x96xf32, #tpu.memory_space<vmem>>, %arg1: memref<96x96xf32, #tpu.memory_space<vmem>>, %arg2: memref<1x96xf32, #tpu.memory_space<vmem>>, %arg3: memref<96x6xf32, #tpu.memory_space<vmem>>, %arg4: memref<1x6xf32, #tpu.memory_space<vmem>>, %arg5: memref<8x6xf32, #tpu.memory_space<vmem>>) attributes {dimension_semantics = [], scalar_prefetch = 0 : i64, scratch_operands = 0 : i64, tpu.core_type = #tpu.core_type<tc>} {
    %c0 = arith.constant 0 : index
    %c0_0 = arith.constant 0 : index
    %0 = vector.load %arg0[%c0, %c0_0] : memref<8x96xf32, #tpu.memory_space<vmem>>, vector<8x96xf32>
    %c0_1 = arith.constant 0 : index
    %c0_2 = arith.constant 0 : index
    %1 = vector.load %arg1[%c0_1, %c0_2] : memref<96x96xf32, #tpu.memory_space<vmem>>, vector<96x96xf32>
    %cst = arith.constant dense<0.000000e+00> : vector<8x96xf32>
    %2 = tpu.matmul %0, %1, %cst {dimension_numbers = #tpu.dot_dimension_numbers<[1], [0], [0], [1], [0, 0, 1, 1], [], []>} : vector<8x96xf32>, vector<96x96xf32>, vector<8x96xf32> -> vector<8x96xf32>
    %c0_3 = arith.constant 0 : index
    %c0_4 = arith.constant 0 : index
    %3 = vector.load %arg2[%c0_3, %c0_4] : memref<1x96xf32, #tpu.memory_space<vmem>>, vector<1x96xf32>
    %4 = vector.broadcast %3 : vector<1x96xf32> to vector<8x96xf32>
    %5 = arith.addf %2, %4 : vector<8x96xf32>
    %cst_5 = arith.constant 0.000000e+00 : f32
    %6 = vector.broadcast %cst_5 : f32 to vector<8x96xf32>
    %7 = arith.maximumf %5, %6 : vector<8x96xf32>
    %c0_6 = arith.constant 0 : index
    %c0_7 = arith.constant 0 : index
    %8 = vector.load %arg3[%c0_6, %c0_7] : memref<96x6xf32, #tpu.memory_space<vmem>>, vector<96x6xf32>
    %cst_8 = arith.constant dense<0.000000e+00> : vector<8x6xf32>
    %9 = tpu.matmul %7, %8, %cst_8 {dimension_numbers = #tpu.dot_dimension_numbers<[1], [0], [0], [1], [0, 0, 1, 1], [], []>} : vector<8x96xf32>, vector<96x6xf32>, vector<8x6xf32> -> vector<8x6xf32>
    %c0_9 = arith.constant 0 : index
    %c0_10 = arith.constant 0 : index
    %10 = vector.load %arg4[%c0_9, %c0_10] : memref<1x6xf32, #tpu.memory_space<vmem>>, vector<1x6xf32>
    %11 = vector.broadcast %10 : vector<1x6xf32> to vector<8x6xf32>
    %12 = arith.addf %9, %11 : vector<8x6xf32>
    %cst_11 = arith.constant 0.000000e+00 : f32
    %13 = vector.broadcast %cst_11 : f32 to vector<8x6xf32>
    %14 = arith.maximumf %12, %13 : vector<8x6xf32>
    %15 = math.absf %12 : vector<8x6xf32>
    %cst_12 = arith.constant 0.000000e+00 : f32
    %16 = vector.broadcast %cst_12 : f32 to vector<8x6xf32>
    %17 = arith.subf %16, %15 : vector<8x6xf32>
    %18 = math.exp %17 : vector<8x6xf32>
    %19 = math.log1p %18 : vector<8x6xf32>
    %20 = arith.addf %14, %19 : vector<8x6xf32>
    %c0_13 = arith.constant 0 : index
    %c0_14 = arith.constant 0 : index
    %21 = vector.load %arg5[%c0_13, %c0_14] : memref<8x6xf32, #tpu.memory_space<vmem>>, vector<8x6xf32>
    tpu.vector_store %arg5[%c0_13, %c0_14], %20 {strides = array<i32>} : memref<8x6xf32, #tpu.memory_space<vmem>>, vector<8x6xf32>,
    return
  }
}

</mosaic_0001>

<llo_original>
// kernel: tpu_custom_call.1
$region0: #{tpu_custom_call.1}
  #allocation0 [shape = 'u32[]', space=smem, size = 0x4, offset = 0x4, fixed_abs, tag = 'smem constant byte address 0x4 - core index']
  #allocation1 [shape = 'u32[144,128]{1,0:T(1,128)}', space=vmem, size = 0x12000, scoped, tag = 'internal scratch']
  %s0 = inlined_call_operand.vmem [shape: f32[8,96], index: 0, kind: input, shape index: {}]
  %s1 = inlined_call_operand.vmem [shape: f32[96,96], index: 1, kind: input, shape index: {}]
  %s2 = inlined_call_operand.vmem [shape: f32[1,96], index: 2, kind: input, shape index: {}]
  %s3 = inlined_call_operand.vmem [shape: f32[96,6], index: 3, kind: input, shape index: {}]
  %s4 = inlined_call_operand.vmem [shape: f32[1,6], index: 4, kind: input, shape index: {}]
  %s5 = inlined_call_operand.hbm [shape: f32[8,6], index: 5, kind: output, shape index: {}]
  %s6 = sld [smem:[#allocation0]]
  $region30: #{tpu_custom_call.1} parent=0
    _
  %s8 = ssub.s32 1, %s6
  %s9 = scalar_select 0, %s8, %s6
  $region1: #{tpu_custom_call.1} parent=0
    #allocation2 [shape = 'u8[4096]{0}', space=vmem, size = 0x1000, scoped, tag = 'output window, operand 0, single buffered']
    #allocation3 [shape = 's32[1]{0}', space=sflag, size = 0x4, scoped, tag = 'scoped memory for tpu_custom_call.1']
    %10 = vsyncpa [#allocation3], 0
    // Predicated region
    $region2: #{tpu_custom_call.1} parent=1 // pred_check
      _
    $region3: #{tpu_custom_call.1} parent=1 // pred_check_branch
      %12 = sbr.rel (0) target = $region5
    $region4: #{tpu_custom_call.1} parent=1 // pred_region
      _
    $region5: #{tpu_custom_call.1} parent=1 // pred_fallthru
      _
    // Predicated region
    $region6: #{tpu_custom_call.1} parent=1 // pred_check
      _
    $region7: #{tpu_custom_call.1} parent=1 // pred_check_branch
      %14 = sbr.rel (0) target = $region9
    $region8: #{tpu_custom_call.1} parent=1 // pred_region
      _
    $region9: #{tpu_custom_call.1} parent=1 // pred_fallthru
      _
    // Predicated region
    $region10: #{tpu_custom_call.1} parent=1 // pred_check
      _
    $region11: #{tpu_custom_call.1} parent=1 // pred_check_branch
      %16 = sbr.rel (0) target = $region13
    $region12: #{tpu_custom_call.1} parent=1 // pred_region
      _
    $region13: #{tpu_custom_call.1} parent=1 // pred_fallthru
      _
    // Predicated region
    $region14: #{tpu_custom_call.1} parent=1 // pred_check
      _
    $region15: #{tpu_custom_call.1} parent=1 // pred_check_branch
      %18 = sbr.rel (0) target = $region17
    $region16: #{tpu_custom_call.1} parent=1 // pred_region
      _
    $region17: #{tpu_custom_call.1} parent=1 // pred_fallthru
      _
    // Predicated region
    $region18: #{tpu_custom_call.1} parent=1 // pred_check
      _
    $region19: #{tpu_custom_call.1} parent=1 // pred_check_branch
      %20 = sbr.rel (0) target = $region21
    $region20: #{tpu_custom_call.1} parent=1 // pred_region
      _
    $region21: #{tpu_custom_call.1} parent=1 // pred_fallthru
      _
    %v21 = vld [vmem:[%s0] sm:$0xff]
    %v22 = vld [vmem:[%s1] sm:$0xff]
    %v23 = vld [vmem:[%s1 + $0x8] sm:$0xff]
    %v24 = vld [vmem:[%s1 + $0x10] sm:$0xff]
    %v25 = vld [vmem:[%s1 + $0x18] sm:$0xff]
    %v26 = vld [vmem:[%s1 + $0x20] sm:$0xff]
    %v27 = vld [vmem:[%s1 + $0x28] sm:$0xff]
    %v28 = vld [vmem:[%s1 + $0x30] sm:$0xff]
    %v29 = vld [vmem:[%s1 + $0x38] sm:$0xff]
    %v30 = vld [vmem:[%s1 + $0x40] sm:$0xff]
    %v31 = vld [vmem:[%s1 + $0x48] sm:$0xff]
    %v32 = vld [vmem:[%s1 + $0x50] sm:$0xff]
    %v33 = vld [vmem:[%s1 + $0x58] sm:$0xff]
    %v34 = vld [vmem:[%s2] sm:$0x1]
    %v36 = vlaneseq
    %v37 = vshrl.u32 %v36, 7
    %v38 = vsub.s32 0, %v37
    %v39 = vrot.slane %v34, %v38
    %vm41 = vcmask 785408
    %v43 = vsel %vm41, %v21, 0
    %45 = vmatprep.subr.mxu0 0.0
    %46 = vmatpush1.msra.mxu0 %v22
    %47 = vmatprep.subr.mxu0 0.0
    %48 = vmatpush1.msra.mxu0 %v23
    %49 = vmatprep.subr.mxu0 0.0
    %50 = vmatpush1.msra.mxu0 %v24
    %51 = vmatprep.subr.mxu0 0.0
    %52 = vmatpush1.msra.mxu0 %v25
    %53 = vmatprep.subr.mxu0 0.0
    %54 = vmatpush1.msra.mxu0 %v26
    %55 = vmatprep.subr.mxu0 0.0
    %56 = vmatpush1.msra.mxu0 %v27
    %57 = vmatprep.subr.mxu0 0.0
    %58 = vmatpush1.msra.mxu0 %v28
    %59 = vmatprep.subr.mxu0 0.0
    %60 = vmatpush1.msra.mxu0 %v29
    %61 = vmatprep.subr.mxu0 0.0
    %62 = vmatpush1.msra.mxu0 %v30
    %63 = vmatprep.subr.mxu0 0.0
    %64 = vmatpush1.msra.mxu0 %v31
    %65 = vmatprep.subr.mxu0 0.0
    %66 = vmatpush1.msra.mxu0 %v32
    %67 = vmatprep.subr.mxu0 0.0
    %68 = vmatpush1.msra.mxu0 %v33
    %69 = vmatprep.subr.mxu0 0.0
    %70 = vmatpush1.msra.mxu0 0.0
    %71 = vmatprep.subr.mxu0 0.0
    %72 = vmatpush1.msra.mxu0 0.0
    %73 = vmatprep.subr.mxu0 0.0
    %74 = vmatpush1.msra.mxu0 0.0
    %75 = vmatprep.subr.mxu0 0.0
    %76 = vmatpush1.msra.mxu0 0.0
    %77 = vmatprep.subr.mxu0 0.0
    %78 = vmatpush1.msra.mxu0 0.0
    %79 = vmatprep.subr.mxu0 0.0
    %80 = vmatpush1.msra.mxu0 0.0
    %81 = vmatprep.subr.mxu0 0.0
    %82 = vmatpush1.msra.mxu0 0.0
    %83 = vmatprep.subr.mxu0 0.0
    %84 = vmatpush1.msra.mxu0 0.0
    %85 = vmatprep.subr.mxu0 0.0
    %86 = vmatpush1.msra.mxu0 0.0
    %87 = vmatprep.subr.mxu0 0.0
    %88 = vmatpush1.msra.mxu0 0.0
    %89 = vmatprep.subr.mxu0 0.0
    %90 = vmatpush1.msra.mxu0 0.0
    %91 = vmatprep.subr.mxu0 0.0
    %92 = vmatpush1.msra.mxu0 0.0
    %93 = vmatprep.subr.mxu0 0.0
    %94 = vmatpush1.msra.mxu0 0.0
    %95 = vmatprep.subr.mxu0 0.0
    %96 = vmatpush1.msra.mxu0 0.0
    %97 = vmatprep.subr.mxu0 0.0
    %98 = vmatpush1.msra.mxu0 0.0
    %99 = vmatprep.subr.mxu0 0.0
    %100 = vmatpush1.msra.mxu0 0.0
    %101 = vmatprep.subr.mxu0 0.0
    %102 = vmatpush1.msra.mxu0 0.0
    %103 = vmatprep.subr.mxu0 0.0
    %104 = vmatpush1.msra.mxu0 0.0
    %105 = vmatprep.subr.mxu0 0.0
    %106 = vmatpush1.msra.mxu0 0.0
    %107 = vmatprep.subr.mxu0 0.0
    %108 = vmatpush1.msra.mxu0 0.0
    %109 = vmatprep.mubr.f32.mxu0 0.0
    %110 = vmatmul.mubr.f32.gmra.mrb[0].mxu0 %v43
    %v111 = vpop.f32.mrb[0].mxu0
    %v112 = vadd.f32 %v39, %v111
    %v113 = vpop.f32.mrb[0].mxu0
    %114 = vdwg.mxu0
    %v115 = vmax.f32 %v112, 0.0
    %v116 = vld [vmem:[%s3] sm:$0xff]
    %v117 = vld [vmem:[%s3 + $0x8] sm:$0xff]
    %v118 = vld [vmem:[%s3 + $0x10] sm:$0xff]
    %v119 = vld [vmem:[%s3 + $0x18] sm:$0xff]
    %v120 = vld [vmem:[%s3 + $0x20] sm:$0xff]
    %v121 = vld [vmem:[%s3 + $0x28] sm:$0xff]
    %v122 = vld [vmem:[%s3 + $0x30] sm:$0xff]
    %v123 = vld [vmem:[%s3 + $0x38] sm:$0xff]
    %v124 = vld [vmem:[%s3 + $0x40] sm:$0xff]
    %v125 = vld [vmem:[%s3 + $0x48] sm:$0xff]
    %v126 = vld [vmem:[%s3 + $0x50] sm:$0xff]
    %v127 = vld [vmem:[%s3 + $0x58] sm:$0xff]
    %v128 = vld [vmem:[%s4] sm:$0x1]
    %v130 = vlaneseq
    %v131 = vshrl.u32 %v130, 7
    %v132 = vsub.s32 0, %v131
    %v133 = vrot.slane %v128, %v132
    %v136 = vsel %vm41, %v115, 0
    %138 = vmatprep.subr.mxu0 0.0
    %139 = vmatpush1.msra.mxu0 %v116
    %140 = vmatprep.subr.mxu0 0.0
    %141 = vmatpush1.msra.mxu0 %v117
    %142 = vmatprep.subr.mxu0 0.0
    %143 = vmatpush1.msra.mxu0 %v118
    %144 = vmatprep.subr.mxu0 0.0
    %145 = vmatpush1.msra.mxu0 %v119
    %146 = vmatprep.subr.mxu0 0.0
    %147 = vmatpush1.msra.mxu0 %v120
    %148 = vmatprep.subr.mxu0 0.0
    %149 = vmatpush1.msra.mxu0 %v121
    %150 = vmatprep.subr.mxu0 0.0
    %151 = vmatpush1.msra.mxu0 %v122
    %152 = vmatprep.subr.mxu0 0.0
    %153 = vmatpush1.msra.mxu0 %v123
    %154 = vmatprep.subr.mxu0 0.0
    %155 = vmatpush1.msra.mxu0 %v124
    %156 = vmatprep.subr.mxu0 0.0
    %157 = vmatpush1.msra.mxu0 %v125
    %158 = vmatprep.subr.mxu0 0.0
    %159 = vmatpush1.msra.mxu0 %v126
    %160 = vmatprep.subr.mxu0 0.0
    %161 = vmatpush1.msra.mxu0 %v127
    %162 = vmatprep.subr.mxu0 0.0
    %163 = vmatpush1.msra.mxu0 0.0
    %164 = vmatprep.subr.mxu0 0.0
    %165 = vmatpush1.msra.mxu0 0.0
    %166 = vmatprep.subr.mxu0 0.0
    %167 = vmatpush1.msra.mxu0 0.0
    %168 = vmatprep.subr.mxu0 0.0
    %169 = vmatpush1.msra.mxu0 0.0
    %170 = vmatprep.subr.mxu0 0.0
    %171 = vmatpush1.msra.mxu0 0.0
    %172 = vmatprep.subr.mxu0 0.0
    %173 = vmatpush1.msra.mxu0 0.0
    %174 = vmatprep.subr.mxu0 0.0
    %175 = vmatpush1.msra.mxu0 0.0
    %176 = vmatprep.subr.mxu0 0.0
    %177 = vmatpush1.msra.mxu0 0.0
    %178 = vmatprep.subr.mxu0 0.0
    %179 = vmatpush1.msra.mxu0 0.0
    %180 = vmatprep.subr.mxu0 0.0
    %181 = vmatpush1.msra.mxu0 0.0
    %182 = vmatprep.subr.mxu0 0.0
    %183 = vmatpush1.msra.mxu0 0.0
    %184 = vmatprep.subr.mxu0 0.0
    %185 = vmatpush1.msra.mxu0 0.0
    %186 = vmatprep.subr.mxu0 0.0
    %187 = vmatpush1.msra.mxu0 0.0
    %188 = vmatprep.subr.mxu0 0.0
    %189 = vmatpush1.msra.mxu0 0.0
    %190 = vmatprep.subr.mxu0 0.0
    %191 = vmatpush1.msra.mxu0 0.0
    %192 = vmatprep.subr.mxu0 0.0
    %193 = vmatpush1.msra.mxu0 0.0
    %194 = vmatprep.subr.mxu0 0.0
    %195 = vmatpush1.msra.mxu0 0.0
    %196 = vmatprep.subr.mxu0 0.0
    %197 = vmatpush1.msra.mxu0 0.0
    %198 = vmatprep.subr.mxu0 0.0
    %199 = vmatpush1.msra.mxu0 0.0
    %200 = vmatprep.subr.mxu0 0.0
    %201 = vmatpush1.msra.mxu0 0.0
    %202 = vmatprep.mubr.f32.mxu0 0.0
    %203 = vmatmul.mubr.f32.gmra.mrb[0].mxu0 %v136
    %v204 = vpop.f32.mrb[0].mxu0
    %v205 = vadd.f32 %v133, %v204
    %v206 = vpop.f32.mrb[0].mxu0
    %207 = vdwg.mxu0
    %v208 = vmax.f32 %v205, 0.0
    %v209 = vand.u32 2147483647, %v205
    %v210 = vsub.f32 0.0, %v209
    %v211 = vmul.f32 %v210, 1.442695
    %v212 = vpow.pop %v211
    %v213 = vadd.f32 %v212, 1.0
    %v214 = vlog2.pop %v213
    %v215 = vmul.f32 %v214, 0.6931472
    %v216 = vmul.f32 -0.5, %v212
    %v217 = vadd.f32 %v216, 1.0
    %v218 = vmul.f32 %v217, %v212
    %v219 = vand.u32 2147483647, %v212
    %vm220 = vcmp.lt.f32.partialorder %v219, 0.0004427343
    %v221 = vsel %vm220, %v218, %v215
    %v222 = vadd.f32 %v208, %v221
    %vm223 = vcmask 48128
    %224 = vst.msk [vmem:[#allocation2] sm:$0xff] %vm223, %v222
    // Predicated region
    $region22: #{tpu_custom_call.1} parent=1 // pred_check
      _
    $region23: #{tpu_custom_call.1} parent=1 // pred_check_branch
      %226 = sbr.rel (0) target = $region25
    $region24: #{tpu_custom_call.1} parent=1 // pred_region
      %s228 = ssub.s32 128, 128
      %229 = vsyncadd [#allocation3], %s228
      %s231 = sshll.u32 [#allocation2], 4
      %s232 = int_to_ptr.vmem [resolvable:$true] %s231
      %234 = dma.vmem_to_hbm [thread:$0]  %s232, 128, %s5, [#allocation3]
    $region25: #{tpu_custom_call.1} parent=1 // pred_fallthru
      _
    // Predicated region
    $region26: #{tpu_custom_call.1} parent=1 // pred_check
      _
    $region27: #{tpu_custom_call.1} parent=1 // pred_check_branch
      %236 = sbr.rel (0) target = $region29
    $region28: #{tpu_custom_call.1} parent=1 // pred_region
      %237 = dma.done [#allocation3], 128
    $region29: #{tpu_custom_call.1} parent=1 // pred_fallthru
      _
    %238 = vsyncpa [#allocation3], 1

</llo_original>
